<compile_context>
chip_gen: v7x
topology: tpu7x:2x2x1
jax: 0.10.0
libtpu: 0.0.40
codegen_flags: <defaults>
</compile_context>

<pallas_src>
import functools

import jax
import jax.numpy as jnp
from jax.experimental import pallas as pl
from jax.experimental.pallas import tpu as pltpu


# ---------------------------------------------------------------------------
# Generation-aware VMEM budget
# ---------------------------------------------------------------------------
try:
    _VMEM_CAP = int(pltpu.get_tpu_info().vmem_capacity_bytes)
except Exception:                       # no query available -> assume tightest (v7x)
    _VMEM_CAP = 64 * 1024 * 1024
_VMEM_LIMIT = max(16 * 1024 * 1024, int(_VMEM_CAP * 0.75))   # scoped limit for Mosaic
_VMEM_BUDGET = int(_VMEM_LIMIT * 0.85)                       # block-sizing budget


def _sublane(dtype):
    """Sublane packing unit: 8 for 32-bit, 16 for 16-bit, 32 for 8-bit dtypes."""
    return {4: 8, 2: 16, 1: 32}.get(jnp.dtype(dtype).itemsize, 8)


def _divisor_tiles(dim, unit):
    """Legal tile sizes along `dim`: multiples of `unit` dividing dim, plus dim itself."""
    cands = {dim}
    t = unit
    while t < dim:
        if dim % t == 0:
            cands.add(t)
        t += unit
    return sorted(cands)


def _fused_tile_c(N, C, L, itemsize, budget, sublane):
    """Channel-group tile for the fused path, or None if no legal tile fits VMEM."""
    per_c = 4 * N * L * itemsize            # in + out blocks, double-buffered
    fits = [t for t in _divisor_tiles(C, sublane) if t * per_c <= budget]
    if not fits:
        return None
    two_step = [t for t in fits if C // t >= 2]   # let both v7x TensorCores run
    return max(two_step or fits)


def _choose_tiles(R, L, itemsize, budget, sublane,
                  bufs_per_elem=4, target_l=4096, target_r=512):
    """(tile_r, tile_l) for the streaming (two-pass / affine) path."""
    # TODO(synk): when L % 128 != 0 the only legal lane block is the full row;
    # a masked-tail tiling would keep pipelining alive for such shapes.
    l_cands = _divisor_tiles(L, 128)
    tile_l = max([t for t in l_cands if t <= target_l] or [min(l_cands)])
    max_r = budget // max(1, bufs_per_elem * tile_l * itemsize)
    r_cands = _divisor_tiles(R, sublane)
    fits = [t for t in r_cands if t <= max_r] or [min(r_cands)]
    pref = [t for t in fits if R // t >= 2] or fits       # >=2 row steps when possible
    tile_r = max([t for t in pref if t <= target_r] or [min(pref)])
    return tile_r, tile_l


# ---------------------------------------------------------------------------
# Pallas kernels
# ---------------------------------------------------------------------------
def _make_fused_kernel(a, b):
    """Fused: per-channel min/max over (batch, spatial) + FMA normalize, one HBM pass."""
    def kernel(x_ref, out_ref, min_ref, max_ref):
        x = x_ref[...].astype(jnp.float32)                         # (N, tc, L)
        mins = jnp.min(jnp.min(x, axis=2, keepdims=True), axis=0, keepdims=True)
        maxs = jnp.max(jnp.max(x, axis=2, keepdims=True), axis=0, keepdims=True)
        denom = maxs - mins               # == max(x - min): monotone constant shift
        scale = a / denom                                          # (1, tc, 1)
        offset = -(mins * scale) - b
        out_ref[...] = (x * scale + offset).astype(out_ref.dtype)
        min_ref[...] = jnp.reshape(mins, min_ref.shape)
        max_ref[...] = jnp.reshape(denom, max_ref.shape)
    return kernel


def _minmax_kernel(x_ref, min_ref, max_ref, mn_scr, mx_scr):
    """Per-row min/max, accumulated in VMEM scratch; outputs written once per row block."""
    l = pl.program_id(1)
    x = x_ref[...].astype(jnp.float32)                             # (tile_r, tile_l)
    bmin = jnp.min(x, axis=1, keepdims=True)
    bmax = jnp.max(x, axis=1, keepdims=True)

    @pl.when(l == 0)
    def _():
        mn_scr[...] = bmin
        mx_scr[...] = bmax

    @pl.when(l != 0)
    def _():
        mn_scr[...] = jnp.minimum(mn_scr[...], bmin)
        mx_scr[...] = jnp.maximum(mx_scr[...], bmax)

    @pl.when(l == pl.num_programs(1) - 1)
    def _():
        min_ref[...] = mn_scr[...]
        max_ref[...] = mx_scr[...]


def _affine_kernel(x_ref, scale_ref, offset_ref, out_ref):
    """out = x * scale + offset with per-row scale/offset (single streaming FMA pass)."""
    x = x_ref[...].astype(jnp.float32)
    out_ref[...] = (x * scale_ref[...] + offset_ref[...]).astype(out_ref.dtype)


# ---------------------------------------------------------------------------
# pallas_call wrappers
# ---------------------------------------------------------------------------
def _fused_call(x3, tile_c, a, b, vmem_limit):
    N, C, L = x3.shape
    return pl.pallas_call(
        _make_fused_kernel(a, b),
        out_shape=(
            jax.ShapeDtypeStruct((N, C, L), x3.dtype),
            jax.ShapeDtypeStruct((C, 1), jnp.float32),
            jax.ShapeDtypeStruct((C, 1), jnp.float32),
        ),
        grid_spec=pltpu.PrefetchScalarGridSpec(
            num_scalar_prefetch=0,
            grid=(C // tile_c,),
            in_specs=[pl.BlockSpec((N, tile_c, L), lambda c: (0, c, 0))],
            out_specs=(
                pl.BlockSpec((N, tile_c, L), lambda c: (0, c, 0)),
                pl.BlockSpec((tile_c, 1), lambda c: (c, 0)),
                pl.BlockSpec((tile_c, 1), lambda c: (c, 0)),
            ),
        ),
        compiler_params=pltpu.CompilerParams(
            dimension_semantics=("parallel",),
            vmem_limit_bytes=vmem_limit,
        ),
    )(x3)


def _minmax_call(x2, tile_r, tile_l, vmem_limit):
    R, L = x2.shape
    return pl.pallas_call(
        _minmax_kernel,
        out_shape=(
            jax.ShapeDtypeStruct((R, 1), jnp.float32),
            jax.ShapeDtypeStruct((R, 1), jnp.float32),
        ),
        grid_spec=pltpu.PrefetchScalarGridSpec(
            num_scalar_prefetch=0,
            grid=(R // tile_r, L // tile_l),
            in_specs=[pl.BlockSpec((tile_r, tile_l), lambda i, l: (i, l))],
            out_specs=(
                pl.BlockSpec((tile_r, 1), lambda i, l: (i, 0)),
                pl.BlockSpec((tile_r, 1), lambda i, l: (i, 0)),
            ),
            scratch_shapes=[pltpu.VMEM((tile_r, 1), jnp.float32),
                            pltpu.VMEM((tile_r, 1), jnp.float32)],
        ),
        compiler_params=pltpu.CompilerParams(
            dimension_semantics=("parallel", "arbitrary"),
            vmem_limit_bytes=vmem_limit,
        ),
    )(x2)


def _affine_call(x2, scale_rows, offset_rows, tile_r, tile_l, vmem_limit):
    R, L = x2.shape
    return pl.pallas_call(
        _affine_kernel,
        out_shape=jax.ShapeDtypeStruct((R, L), x2.dtype),
        grid_spec=pltpu.PrefetchScalarGridSpec(
            num_scalar_prefetch=0,
            grid=(R // tile_r, L // tile_l),
            in_specs=[
                pl.BlockSpec((tile_r, tile_l), lambda i, l: (i, l)),
                pl.BlockSpec((tile_r, 1), lambda i, l: (i, 0)),
                pl.BlockSpec((tile_r, 1), lambda i, l: (i, 0)),
            ],
            out_specs=pl.BlockSpec((tile_r, tile_l), lambda i, l: (i, l)),
        ),
        compiler_params=pltpu.CompilerParams(
            dimension_semantics=("parallel", "parallel"),
            vmem_limit_bytes=vmem_limit,
        ),
    )(x2, scale_rows, offset_rows)


# ---------------------------------------------------------------------------
# Forward building blocks (all traced inside a single jit per step)
# ---------------------------------------------------------------------------
def _rows_from_channel(v_c, N, C):
    """Broadcast a per-channel (C,) f32 vector to per-row (N*C, 1)."""
    return jnp.broadcast_to(v_c[None, :], (N, C)).reshape(N * C, 1)


def _batch_stats_normalize(x, a, b, budget, vmem_limit):
    """Per-batch per-channel min-max normalize. Returns (out_nchw, mins_c, denom_c)."""
    N, C, H, W = x.shape
    L = H * W
    itemsize = jnp.dtype(x.dtype).itemsize
    sub = _sublane(x.dtype)

    tile_c = _fused_tile_c(N, C, L, itemsize, budget, sub)
    if tile_c is not None:
        # Fused single-pass: whole (N, tile_c, H*W) slab resident in VMEM.
        x3 = x.reshape(N, C, L)                        # free contiguous view of NCHW
        out3, mins, maxs = _fused_call(x3, tile_c, a, b, vmem_limit)
        return out3.reshape(N, C, H, W), mins.reshape(C), maxs.reshape(C)

    # Fallback: two streaming passes (reduce, then one FMA pass).
    R = N * C
    x2 = x.reshape(R, L)
    tile_r, tile_l = _choose_tiles(R, L, itemsize, budget, sub)
    row_min, row_max = _minmax_call(x2, tile_r, tile_l, vmem_limit)
    mins_c = jnp.min(row_min.reshape(N, C), axis=0)    # tiny (N*C) combine in plain JAX
    maxs_c = jnp.max(row_max.reshape(N, C), axis=0)
    denom_c = maxs_c - mins_c                          # == max(x - min) exactly
    scale_c = a / denom_c
    offset_c = -mins_c * scale_c - b
    out2 = _affine_call(x2,
                        _rows_from_channel(scale_c, N, C),
                        _rows_from_channel(offset_c, N, C),
                        tile_r, tile_l, vmem_limit)
    return out2.reshape(N, C, H, W), mins_c, denom_c


@functools.partial(jax.jit, static_argnames=("mode", "a", "b"))
def _train_step(x, running_min, running_max, eaf, *, mode, a, b):
    out, mins_c, denom_c = _batch_stats_normalize(x, a, b, _VMEM_BUDGET, _VMEM_LIMIT)
    C = x.shape[1]
    mins4 = mins_c.reshape(1, C, 1, 1).astype(running_min.dtype)
    maxs4 = denom_c.reshape(1, C, 1, 1).astype(running_max.dtype)
    if mode == 0:
        new_min = jnp.where(mins4 < running_min, mins4, running_min)
        new_max = jnp.where(maxs4 > running_max, maxs4, running_max)
    elif mode == 1:
        new_min = eaf * mins4 + (1.0 - eaf) * running_min
        new_max = eaf * maxs4 + (1.0 - eaf) * running_max
    else:
        new_min, new_max = running_min, running_max
    return out, new_min, new_max


@functools.partial(jax.jit, static_argnames=("a", "b"))
def _eval_running_step(x, running_min, running_max, *, a, b):
    N, C, H, W = x.shape
    L = H * W
    R = N * C
    rmin_c = running_min.reshape(C).astype(jnp.float32)
    rmax_c = running_max.reshape(C).astype(jnp.float32)
    scale_c = a / rmax_c
    offset_c = -rmin_c * scale_c - b
    sub = _sublane(x.dtype)
    tile_r, tile_l = _choose_tiles(R, L, jnp.dtype(x.dtype).itemsize, _VMEM_BUDGET, sub)
    out2 = _affine_call(x.reshape(R, L),
                        _rows_from_channel(scale_c, N, C),
                        _rows_from_channel(offset_c, N, C),
                        tile_r, tile_l, _VMEM_LIMIT)
    return out2.reshape(N, C, H, W)


@functools.partial(jax.jit, static_argnames=("a", "b"))
def _batch_stats_step(x, *, a, b):
    out, _, _ = _batch_stats_normalize(x, a, b, _VMEM_BUDGET, _VMEM_LIMIT)
    return out


# ---------------------------------------------------------------------------
# Module wrapper (buffer bookkeeping in Python/JAX, hot path in Pallas)
# ---------------------------------------------------------------------------
class ApproxMinMaxNorm2d:
    def __init__(self, num_features, a=2.0, b=1.0, mode=1):
        # Deterministic init, matching the PyTorch register_buffer defaults.
        self.running_max = jnp.ones((1, num_features, 1, 1), jnp.float32)
        self.running_min = jnp.ones((1, num_features, 1, 1), jnp.float32)
        self.num_batches_tracked = 0
        self.mode = int(mode)
        self.a = float(a)
        self.b = float(b)
        self.training = True

    def __call__(self, x):
        if self.training:
            self.num_batches_tracked += 1
            eaf = 1.0 if self.num_batches_tracked == 1 else 0.1
            out, new_min, new_max = _train_step(
                x, self.running_min, self.running_max, jnp.float32(eaf),
                mode=self.mode, a=self.a, b=self.b)
            self.running_min = new_min
            self.running_max = new_max
            return out
        if self.mode != 2:
            return _eval_running_step(x, self.running_min, self.running_max,
                                      a=self.a, b=self.b)
        # mode == 2 eval: per-batch stats, no buffer update.
        return _batch_stats_step(x, a=self.a, b=self.b)


# ---------------------------------------------------------------------------
# Pure-JAX reference (mirrors the PyTorch forward) for sanity checks
# ---------------------------------------------------------------------------
def _ref_train(x, a, b):
    mins = jnp.min(x, axis=(0, 2, 3), keepdims=True)
    xs = x - mins
    maxs = jnp.max(xs, axis=(0, 2, 3), keepdims=True)
    return a * (xs / maxs) - b, mins, maxs


def _ref_eval(x, rmin, rmax, a, b):
    return a * ((x - rmin) / rmax) - b


if __name__ == "__main__":
    key = jax.random.PRNGKey(0)
    N, C, H, W = 2, 4, 16, 16
    x = jax.random.normal(key, (N, C, H, W), dtype=jnp.float32)

    mod = ApproxMinMaxNorm2d(num_features=C, a=2.0, b=1.0, mode=1)

    # --- training step (fused Pallas kernel + buffer updates) -------------
    mod.training = True
    out_train = mod(x)
    jax.block_until_ready(out_train)

    ref_train, ref_mins, ref_maxs = _ref_train(x, mod.a, mod.b)
    assert jnp.allclose(out_train, ref_train, atol=1e-5, rtol=1e-5)
    assert jnp.allclose(mod.running_min, ref_mins, atol=1e-6)
    assert jnp.allclose(mod.running_max, ref_maxs, atol=1e-6)

    # --- eval step (running stats, single streaming FMA kernel) -----------
    mod.training = False
    out_eval = mod(x)
    jax.block_until_ready(out_eval)
    ref_eval = _ref_eval(x, mod.running_min, mod.running_max, mod.a, mod.b)
    assert jnp.allclose(out_eval, ref_eval, atol=1e-5, rtol=1e-5)

    # --- eval with mode == 2 (per-batch stats, no buffer update) ----------
    mod2 = ApproxMinMaxNorm2d(num_features=C, a=2.0, b=1.0, mode=2)
    mod2.training = False
    out_eval2 = mod2(x)
    jax.block_until_ready(out_eval2)
    assert jnp.allclose(out_eval2, ref_train, atol=1e-5, rtol=1e-5)

    # --- two-pass fallback path (forced by a tiny block-sizing budget) ----
    out_fb, mins_fb, denom_fb = jax.jit(functools.partial(
        _batch_stats_normalize, a=2.0, b=1.0,
        budget=4096, vmem_limit=_VMEM_LIMIT))(x)
    jax.block_until_ready(out_fb)
    assert jnp.allclose(out_fb, ref_train, atol=1e-5, rtol=1e-5)
    assert jnp.allclose(mins_fb.reshape(1, C, 1, 1), ref_mins, atol=1e-6)
    assert jnp.allclose(denom_fb.reshape(1, C, 1, 1), ref_maxs, atol=1e-6)

    print("KERNEL_OK")
</pallas_src>

<mosaic_0001>
module attributes {stable_mosaic.version = 11 : i64} {
  func.func @kernel(%arg0: i32, %arg1: memref<2x4x256xf32, #tpu.memory_space<vmem>>, %arg2: memref<2x4x256xf32, #tpu.memory_space<vmem>>, %arg3: memref<4x1xf32, #tpu.memory_space<vmem>>, %arg4: memref<4x1xf32, #tpu.memory_space<vmem>>) attributes {dimension_semantics = [#tpu.dimension_semantics<parallel>], iteration_bounds = array<i64: 1>, scalar_prefetch = 0 : i64, scratch_operands = 0 : i64, tpu.core_type = #tpu.core_type<tc>, window_params = [{transform_indices = @transform_0, window_bounds = array<i64: 2, 4, 256>}, {transform_indices = @transform_1, window_bounds = array<i64: 2, 4, 256>}, {transform_indices = @transform_2, window_bounds = array<i64: 4, 1>}, {transform_indices = @transform_3, window_bounds = array<i64: 4, 1>}]} {
    %c0 = arith.constant 0 : index
    %c0_0 = arith.constant 0 : index
    %c0_1 = arith.constant 0 : index
    %0 = vector.load %arg1[%c0, %c0_0, %c0_1] : memref<2x4x256xf32, #tpu.memory_space<vmem>>, vector<2x4x256xf32>
    %cst = arith.constant dense<0x7F800000> : vector<2x4xf32>
    %1 = vector.multi_reduction <minimumf>, %0, %cst [2] : vector<2x4x256xf32> to vector<2x4xf32>
    %2 = vector.shape_cast %1 : vector<2x4xf32> to vector<2x4x1xf32>
    %cst_2 = arith.constant dense<0x7F800000> : vector<4x1xf32>
    %3 = vector.multi_reduction <minimumf>, %2, %cst_2 [0] : vector<2x4x1xf32> to vector<4x1xf32>
    %4 = vector.shape_cast %3 : vector<4x1xf32> to vector<1x4x1xf32>
    %cst_3 = arith.constant dense<0xFF800000> : vector<2x4xf32>
    %5 = vector.multi_reduction <maximumf>, %0, %cst_3 [2] : vector<2x4x256xf32> to vector<2x4xf32>
    %6 = vector.shape_cast %5 : vector<2x4xf32> to vector<2x4x1xf32>
    %cst_4 = arith.constant dense<0xFF800000> : vector<4x1xf32>
    %7 = vector.multi_reduction <maximumf>, %6, %cst_4 [0] : vector<2x4x1xf32> to vector<4x1xf32>
    %8 = vector.shape_cast %7 : vector<4x1xf32> to vector<1x4x1xf32>
    %9 = arith.subf %8, %4 : vector<1x4x1xf32>
    %cst_5 = arith.constant 2.000000e+00 : f32
    %10 = vector.broadcast %cst_5 : f32 to vector<1x4x1xf32>
    %11 = arith.divf %10, %9 : vector<1x4x1xf32>
    %12 = arith.mulf %4, %11 : vector<1x4x1xf32>
    %cst_6 = arith.constant 0.000000e+00 : f32
    %13 = vector.broadcast %cst_6 : f32 to vector<1x4x1xf32>
    %14 = arith.subf %13, %12 : vector<1x4x1xf32>
    %cst_7 = arith.constant 1.000000e+00 : f32
    %15 = vector.broadcast %cst_7 : f32 to vector<1x4x1xf32>
    %16 = arith.subf %14, %15 : vector<1x4x1xf32>
    %17 = vector.broadcast %11 : vector<1x4x1xf32> to vector<2x4x256xf32>
    %18 = arith.mulf %0, %17 : vector<2x4x256xf32>
    %19 = vector.broadcast %16 : vector<1x4x1xf32> to vector<2x4x256xf32>
    %20 = arith.addf %18, %19 : vector<2x4x256xf32>
    %c0_8 = arith.constant 0 : index
    %c0_9 = arith.constant 0 : index
    %c0_10 = arith.constant 0 : index
    %21 = vector.load %arg2[%c0_8, %c0_9, %c0_10] : memref<2x4x256xf32, #tpu.memory_space<vmem>>, vector<2x4x256xf32>
    tpu.vector_store %arg2[%c0_8, %c0_9, %c0_10], %20 {strides = array<i32>} : memref<2x4x256xf32, #tpu.memory_space<vmem>>, vector<2x4x256xf32>,
    %22 = vector.shape_cast %4 : vector<1x4x1xf32> to vector<4x1xf32>
    %c0_11 = arith.constant 0 : index
    %c0_12 = arith.constant 0 : index
    %23 = vector.load %arg3[%c0_11, %c0_12] : memref<4x1xf32, #tpu.memory_space<vmem>>, vector<4x1xf32>
    tpu.vector_store %arg3[%c0_11, %c0_12], %22 {strides = array<i32>} : memref<4x1xf32, #tpu.memory_space<vmem>>, vector<4x1xf32>,
    %24 = vector.shape_cast %9 : vector<1x4x1xf32> to vector<4x1xf32>
    %c0_13 = arith.constant 0 : index
    %c0_14 = arith.constant 0 : index
    %25 = vector.load %arg4[%c0_13, %c0_14] : memref<4x1xf32, #tpu.memory_space<vmem>>, vector<4x1xf32>
    tpu.vector_store %arg4[%c0_13, %c0_14], %24 {strides = array<i32>} : memref<4x1xf32, #tpu.memory_space<vmem>>, vector<4x1xf32>,
    return
  }
  func.func @transform_0(%arg0: i32) -> (i32, i32, i32) {
    %c0_i32 = arith.constant 0 : i32
    %c0_i32_0 = arith.constant 0 : i32
    %c0_i32_1 = arith.constant 0 : i32
    return %c0_i32, %arg0, %c0_i32_0 : i32, i32, i32
  }
  func.func @transform_1(%arg0: i32) -> (i32, i32, i32) {
    %c0_i32 = arith.constant 0 : i32
    %c0_i32_0 = arith.constant 0 : i32
    %c0_i32_1 = arith.constant 0 : i32
    return %c0_i32, %arg0, %c0_i32_0 : i32, i32, i32
  }
  func.func @transform_2(%arg0: i32) -> (i32, i32) {
    %c0_i32 = arith.constant 0 : i32
    %c0_i32_0 = arith.constant 0 : i32
    return %arg0, %c0_i32 : i32, i32
  }
  func.func @transform_3(%arg0: i32) -> (i32, i32) {
    %c0_i32 = arith.constant 0 : i32
    %c0_i32_0 = arith.constant 0 : i32
    return %arg0, %c0_i32 : i32, i32
  }
}

</mosaic_0001>

<llo_original>
// kernel: _train_step.1
$region0: #{_train_step.1}
  #allocation0 [shape = 'u32[]', space=smem, size = 0x4, offset = 0x4, fixed_abs, tag = 'smem constant byte address 0x4 - core index']
  #allocation1 [shape = 'u32[144,128]{1,0:T(1,128)}', space=vmem, size = 0x12000, scoped, tag = 'internal scratch']
  %s0 = inlined_call_operand.vmem [shape: f32[2,4,256], index: 0, kind: input, shape index: {}]
  %s1 = inlined_call_operand.vmem [shape: f32[2,4,256], index: 1, kind: output, shape index: {0}]
  %s2 = inlined_call_operand.vmem [shape: f32[4,1], index: 2, kind: output, shape index: {1}]
  %s3 = inlined_call_operand.vmem [shape: f32[4,1], index: 3, kind: output, shape index: {2}]
  %4 = xla_tuple %s1, %s2, %s3
  %s5 = sld [smem:[#allocation0]]
  $region30: #{_train_step.1} parent=0
    _
  %s7 = ssub.s32 1, %s5
  %s8 = scalar_select 0, %s7, %s5
  // Predicated region
  $region2: #{_train_step.1} parent=0 // pred_check
    _
  $region3: #{_train_step.1} parent=0 // pred_check_branch
    %10 = sbr.rel (0) target = $region5
  $region4: #{_train_step.1} parent=0 // pred_region
    _
  $region5: #{_train_step.1} parent=0 // pred_fallthru
    _
  %v11 = vld [vmem:[%s0] sm:$0xff]
  %v12 = vld [vmem:[%s0 + $0x8] sm:$0xff]
  %v15 = vcombine.high %v11, %v11
  %v16 = vcombine.high %v12, %v12
  %vm19 = vcmask 1043456
  %v20 = vsel %vm19, %v11, inf
  %v21 = vsel %vm19, %v15, inf
  %v22 = vmin.f32 %v20, %v21
  %23 = vmin.xlane.f32.xlu0 %v22
  %v24 = vpop.xlane.xlu0 %23
  %v25 = vsel %vm19, %v12, inf
  %v26 = vsel %vm19, %v16, inf
  %v27 = vmin.f32 %v25, %v26
  %28 = vmin.xlane.f32.xlu0 %v27
  %v29 = vpop.xlane.xlu0 %28
  %v30 = vsel %vm19, %v24, inf
  %v31 = vsel %vm19, %v29, inf
  %v32 = vmin.f32 %v30, %v31
  %v33 = vsel %vm19, %v11, -inf
  %v34 = vsel %vm19, %v15, -inf
  %v35 = vmax.f32 %v33, %v34
  %36 = vmax.xlane.f32.xlu0 %v35
  %v37 = vpop.xlane.xlu0 %36
  %v38 = vsel %vm19, %v12, -inf
  %v39 = vsel %vm19, %v16, -inf
  %v40 = vmax.f32 %v38, %v39
  %41 = vmax.xlane.f32.xlu0 %v40
  %v42 = vpop.xlane.xlu0 %41
  %v43 = vsel %vm19, %v37, -inf
  %v44 = vsel %vm19, %v42, -inf
  %v45 = vmax.f32 %v43, %v44
  %v46 = vsub.f32 %v45, %v32
  %v47 = vrcp.pop %v46
  %v48 = vmul.f32 2.0, %v47
  %v49 = vmul.f32 %v32, %v48
  %v50 = vsub.f32 0.0, %v49
  %v51 = vsub.f32 %v50, 1.0
  %v54 = vunpack.c.l.s4 839922192
  %v55 = vunpack.c.0.s8 %v54
  %v56 = vlaneseq
  %v57 = vshrl.u32 %v56, 7
  %v58 = vsub.s32 %v55, %v57
  %v59 = vrot.slane %v48, %v58
  %v61 = vmul.f32 %v11, %v59
  %v62 = vmul.f32 %v12, %v59
  %v65 = vunpack.c.l.s4 839922192
  %v66 = vunpack.c.0.s8 %v65
  %v67 = vlaneseq
  %v68 = vshrl.u32 %v67, 7
  %v69 = vsub.s32 %v66, %v68
  %v70 = vrot.slane %v51, %v69
  %v72 = vadd.f32 %v61, %v70
  %v73 = vadd.f32 %v62, %v70
  %74 = vst [vmem:[%s1] sm:$0xff] %v72
  %75 = vst [vmem:[%s1 + $0x8] sm:$0xff] %v73
  %vm76 = vcmask 3072
  %77 = vst.msk [vmem:[%s2] sm:$0xf] %vm76, %v32
  %78 = vst.msk [vmem:[%s3] sm:$0xf] %vm76, %v46
  // Predicated region
  $region6: #{_train_step.1} parent=0 // pred_check
    _
  $region7: #{_train_step.1} parent=0 // pred_check_branch
    %80 = sbr.rel (0) target = $region9
  $region8: #{_train_step.1} parent=0 // pred_region
    _
  $region9: #{_train_step.1} parent=0 // pred_fallthru
    _
  // Predicated region
  $region10: #{_train_step.1} parent=0 // pred_check
    _
  $region11: #{_train_step.1} parent=0 // pred_check_branch
    %82 = sbr.rel (0) target = $region13
  $region12: #{_train_step.1} parent=0 // pred_region
    _
  $region13: #{_train_step.1} parent=0 // pred_fallthru
    _
  // Predicated region
  $region14: #{_train_step.1} parent=0 // pred_check
    _
  $region15: #{_train_step.1} parent=0 // pred_check_branch
    %84 = sbr.rel (0) target = $region17
  $region16: #{_train_step.1} parent=0 // pred_region
    _
  $region17: #{_train_step.1} parent=0 // pred_fallthru
    _
  // Predicated region
  $region18: #{_train_step.1} parent=0 // pred_check
    _
  $region19: #{_train_step.1} parent=0 // pred_check_branch
    %86 = sbr.rel (0) target = $region21
  $region20: #{_train_step.1} parent=0 // pred_region
    _
  $region21: #{_train_step.1} parent=0 // pred_fallthru
    _
  // Predicated region
  $region22: #{_train_step.1} parent=0 // pred_check
    _
  $region23: #{_train_step.1} parent=0 // pred_check_branch
    %88 = sbr.rel (0) target = $region25
  $region24: #{_train_step.1} parent=0 // pred_region
    _
  $region25: #{_train_step.1} parent=0 // pred_fallthru
    _
  // Predicated region
  $region26: #{_train_step.1} parent=0 // pred_check
    _
  $region27: #{_train_step.1} parent=0 // pred_check_branch
    %90 = sbr.rel (0) target = $region29
  $region28: #{_train_step.1} parent=0 // pred_region
    _
  $region29: #{_train_step.1} parent=0 // pred_fallthru
    _

</llo_original>
